<compile_context>
chip_gen: v7x
topology: tpu7x:2x2x1
jax: 0.10.0
libtpu: 0.0.40
codegen_flags: <defaults>
</compile_context>

<pallas_src>
import functools
import math

import jax
import jax.numpy as jnp
from jax.experimental import pallas as pl
from jax.experimental.pallas import tpu as pltpu

# ---- module hyperparameters (small, consistent with the PyTorch module) ----
BATCH = 2
NUM_TOKENS = 8          # num_tokens_q == num_tokens_kv
NUM_HEADS = 2
KV_CHANNELS = 16        # d_k
D_MODEL = NUM_HEADS * KV_CHANNELS   # 32
QKV_MULT = 3            # use_qkv=True


def _attention_kernel(x_ref, wqkv_ref, wh_ref, bh_ref, o_ref, hcat_ref, *, B, T, H, dk):
    """Single invocation over the whole (B*T, D) problem.

    x_ref    : (B*T, D)   all query tokens, batch folded into rows (f32)
    wqkv_ref : (D, 3*D)   qkv weight, columns reordered to [Q_all|K_all|V_all],
                          Q columns pre-scaled by 1/sqrt(d_k), bf16
    wh_ref   : (D, D)     output projection weight (pre-transposed), bf16
    bh_ref   : (1, D)     output projection bias (f32)
    o_ref    : (B*T, D)   output
    hcat_ref : (B*T, D)   VMEM scratch holding the concatenated per-head outputs
    """
    BT = B * T
    D = H * dk

    # Fused QKV projection for all (batch, token) rows: one MXU matmul,
    # bf16 operands, f32 accumulation.  1/sqrt(d_k) already folded into W_q.
    x = x_ref[...].astype(jnp.bfloat16)                               # (BT, D)
    qkv = jnp.dot(x, wqkv_ref[...],
                  preferred_element_type=jnp.float32)                 # (BT, 3D) f32

    # Block-diagonal additive mask over the folded batch axis: entries whose row
    # and column belong to different batch elements get -1e30, so after the
    # row-max subtraction exp() underflows to exactly 0 (no cross-batch terms).
    # T is a power of two (8 here, 64 in CeresTrain) -> block id via shift.
    shift = int(T).bit_length() - 1
    row_blk = jax.lax.broadcasted_iota(jnp.int32, (BT, BT), 0) >> shift
    col_blk = jax.lax.broadcasted_iota(jnp.int32, (BT, BT), 1) >> shift
    mask = jnp.where(row_blk == col_blk,
                     jnp.float32(0.0), jnp.float32(-1e30))            # (BT, BT)

    for h in range(H):  # H is tiny & static -> fully unrolled
        q = qkv[:, h * dk:(h + 1) * dk]                       # (BT, dk), pre-scaled
        k = qkv[:, D + h * dk:D + (h + 1) * dk]               # (BT, dk)
        v = qkv[:, 2 * D + h * dk:2 * D + (h + 1) * dk]       # (BT, dk)

        # Scores: single 2-D matmul contracting dk (no explicit transpose).
        s = jax.lax.dot_general(
            q.astype(jnp.bfloat16), k.astype(jnp.bfloat16),
            (((1,), (1,)), ((), ())),
            preferred_element_type=jnp.float32)               # (BT, BT) f32
        s = s + mask
        s = s - jnp.max(s, axis=-1, keepdims=True)
        p = jnp.exp(s)                                        # off-block exactly 0
        p = p / jnp.sum(p, axis=-1, keepdims=True)            # exact divide, f32

        # P @ V as a single 2-D matmul; off-block probabilities are exactly 0.
        hh = jnp.dot(p.astype(jnp.bfloat16), v.astype(jnp.bfloat16),
                     preferred_element_type=jnp.float32)      # (BT, dk)
        hcat_ref[:, h * dk:(h + 1) * dk] = hh

    # Single output projection over the concatenated heads.
    out = jnp.dot(hcat_ref[...].astype(jnp.bfloat16), wh_ref[...],
                  preferred_element_type=jnp.float32)         # (BT, D)
    o_ref[...] = (out + bh_ref[...]).astype(o_ref.dtype)


def prepare_attention_weights(w_qkv, w_h, b_h, *, num_heads=NUM_HEADS, dk=KV_CHANNELS):
    """One-time weight prep (run at weight-load time, NOT per forward call):
    reorder qkv columns head-major into [Q_all | K_all | V_all], fold 1/sqrt(d_k)
    into the Q columns, and pre-cast the MXU weights to bf16."""
    D = num_heads * dk
    # torch column layout per head h: [Q_h | K_h | V_h]
    #   -> reorder to [Q_h0..Q_h{H-1} | K_h0.. | V_h0..]
    w4 = w_qkv.reshape(D, num_heads, 3, dk)
    w_r = jnp.transpose(w4, (0, 2, 1, 3)).reshape(D, 3 * D)
    scale = jnp.concatenate(
        [jnp.full((D,), 1.0 / math.sqrt(dk), w_r.dtype),
         jnp.ones((2 * D,), w_r.dtype)])
    w_r = w_r * scale[None, :]
    return (w_r.astype(jnp.bfloat16),
            w_h.astype(jnp.bfloat16),
            b_h.astype(jnp.float32))


@jax.jit
def dot_product_attention(x, query, key, value, w_qkv_p, w_h_p, b_h):
    """Mirrors DotProductAttention.forward(x, query, key, value) for the
    use_qkv / no-extras configuration: only `query` is consumed (x/key/value are
    accepted to mirror the PyTorch forward signature)."""
    del x, key, value
    B, T, D = query.shape
    H, dk = NUM_HEADS, KV_CHANNELS
    assert D == H * dk
    assert T & (T - 1) == 0, "in-kernel block mask uses a shift; T must be a power of 2"

    # Fold batch into rows: whole problem in one grid step.
    x_flat = query.reshape(B * T, D)
    kernel = functools.partial(_attention_kernel, B=B, T=T, H=H, dk=dk)

    out_flat = pl.pallas_call(
        kernel,
        out_shape=jax.ShapeDtypeStruct((B * T, D), query.dtype),
        grid=(1,),
        in_specs=[
            pl.BlockSpec((B * T, D), lambda i: (0, 0)),
            pl.BlockSpec((D, QKV_MULT * D), lambda i: (0, 0)),
            pl.BlockSpec((D, D), lambda i: (0, 0)),
            pl.BlockSpec((1, D), lambda i: (0, 0)),
        ],
        out_specs=pl.BlockSpec((B * T, D), lambda i: (0, 0)),
        scratch_shapes=[pltpu.VMEM((B * T, D), jnp.float32)],
        compiler_params=pltpu.CompilerParams(
            dimension_semantics=("arbitrary",)),
    )(x_flat, w_qkv_p, w_h_p, b_h)

    return out_flat.reshape(B, T, D)


def _reference(query, w_qkv, w_h, b_h):
    """Plain-JAX f32 reference replicating the torch forward (use_qkv, no extras)."""
    B, T, D = query.shape
    qkv = query @ w_qkv                                  # (B, T, 3D), no bias
    qkv = qkv.reshape(B, T, NUM_HEADS, 3 * KV_CHANNELS).transpose(0, 2, 1, 3)
    Q, K, V = jnp.split(qkv, 3, axis=-1)
    s = jnp.einsum("bhqd,bhkd->bhqk", Q, K) / math.sqrt(KV_CHANNELS)
    a = jax.nn.softmax(s, axis=-1)
    Hh = jnp.einsum("bhqk,bhkd->bhqd", a, V)             # (B,H,T,d_k)
    h_cat = Hh.transpose(0, 2, 1, 3).reshape(B, T, D)
    return h_cat @ w_h + b_h


if __name__ == "__main__":
    key = jax.random.PRNGKey(0)
    k1, k2, k3, k4, k5 = jax.random.split(key, 5)

    # deterministic synthetic parameters (torch Linear shapes, pre-transposed)
    # qkv: Linear(D_MODEL, 3*D_MODEL, bias=False)  -> weight (D, 3D) here
    w_qkv = (jax.random.normal(k1, (D_MODEL, QKV_MULT * D_MODEL), jnp.float32)
             * (1.0 / math.sqrt(D_MODEL)))
    # W_h: Linear(D_MODEL, D_MODEL, bias=True) -> weight (D, D), bias (1, D)
    w_h = (jax.random.normal(k2, (D_MODEL, D_MODEL), jnp.float32)
           * (1.0 / math.sqrt(D_MODEL)))
    b_h = jax.random.normal(k3, (1, D_MODEL), jnp.float32) * 0.01

    # inputs (x/key/value present only to mirror the torch forward signature)
    query = jax.random.normal(k4, (BATCH, NUM_TOKENS, D_MODEL), jnp.float32)
    x = query
    kv = jax.random.normal(k5, (BATCH, NUM_TOKENS, D_MODEL), jnp.float32)

    # One-time weight prep, hoisted out of the per-call path.
    w_qkv_p, w_h_p, b_h_p = prepare_attention_weights(w_qkv, w_h, b_h)

    out = dot_product_attention(x, query, kv, kv, w_qkv_p, w_h_p, b_h_p)
    out = jax.block_until_ready(out)

    ref = _reference(query, w_qkv, w_h, b_h)
    assert out.shape == (BATCH, NUM_TOKENS, D_MODEL)
    # bf16 MXU operands (per perf review) -> compare at bf16-level tolerance; the
    # softmax itself stays f32.  A layout/semantics bug would give O(1) errors,
    # far above this threshold.
    assert jnp.allclose(out, ref, atol=5e-2, rtol=5e-2), "mismatch vs reference"

    # TODO(synk): smolgen / rpe / rel_bias / nonlinear-attention / qk-norm / softcap
    # branches of the module are config-gated off in this configuration and not implemented.
    print("KERNEL_OK")
</pallas_src>

<mosaic_0001>
module attributes {stable_mosaic.version = 11 : i64} {
  func.func @_attention_kernel(%arg0: i32, %arg1: memref<16x32xf32, #tpu.memory_space<vmem>>, %arg2: memref<32x96xbf16, #tpu.memory_space<vmem>>, %arg3: memref<32x32xbf16, #tpu.memory_space<vmem>>, %arg4: memref<1x32xf32, #tpu.memory_space<vmem>>, %arg5: memref<16x32xf32, #tpu.memory_space<vmem>>, %arg6: memref<16x32xf32, #tpu.memory_space<vmem>>) attributes {dimension_semantics = [#tpu.dimension_semantics<arbitrary>], iteration_bounds = array<i64: 1>, scalar_prefetch = 0 : i64, scratch_operands = 1 : i64, tpu.core_type = #tpu.core_type<tc>, window_params = [{pipeline_mode = #tpu.pipeline_mode<synchronous>, transform_indices = @transform_0, window_bounds = array<i64: 16, 32>}, {pipeline_mode = #tpu.pipeline_mode<synchronous>, transform_indices = @transform_1, window_bounds = array<i64: 32, 96>}, {pipeline_mode = #tpu.pipeline_mode<synchronous>, transform_indices = @transform_2, window_bounds = array<i64: 32, 32>}, {pipeline_mode = #tpu.pipeline_mode<synchronous>, transform_indices = @transform_3, window_bounds = array<i64: 1, 32>}, {pipeline_mode = #tpu.pipeline_mode<synchronous>, transform_indices = @transform_4, window_bounds = array<i64: 16, 32>}]} {
    %c0 = arith.constant 0 : index
    %c0_0 = arith.constant 0 : index
    %0 = vector.load %arg1[%c0, %c0_0] : memref<16x32xf32, #tpu.memory_space<vmem>>, vector<16x32xf32>
    %1 = arith.truncf %0 : vector<16x32xf32> to vector<16x32xbf16>
    %c0_1 = arith.constant 0 : index
    %c0_2 = arith.constant 0 : index
    %2 = vector.load %arg2[%c0_1, %c0_2] : memref<32x96xbf16, #tpu.memory_space<vmem>>, vector<32x96xbf16>
    %cst = arith.constant dense<0.000000e+00> : vector<16x96xf32>
    %3 = tpu.matmul %1, %2, %cst {dimension_numbers = #tpu.dot_dimension_numbers<[1], [0], [0], [1], [0, 0, 1, 1], [], []>} : vector<16x32xbf16>, vector<32x96xbf16>, vector<16x96xf32> -> vector<16x96xf32>
    %4 = tpu.iota {dimensions = array<i32: 0>} : vector<16x16xi32>
    %c3_i32 = arith.constant 3 : i32
    %5 = vector.broadcast %c3_i32 : i32 to vector<16x16xi32>
    %6 = arith.shrsi %4, %5 : vector<16x16xi32>
    %7 = tpu.iota {dimensions = array<i32: 1>} : vector<16x16xi32>
    %c3_i32_3 = arith.constant 3 : i32
    %8 = vector.broadcast %c3_i32_3 : i32 to vector<16x16xi32>
    %9 = arith.shrsi %7, %8 : vector<16x16xi32>
    %10 = arith.cmpi eq, %6, %9 : vector<16x16xi32>
    %cst_4 = arith.constant 0.000000e+00 : f32
    %cst_5 = arith.constant -1.000000e+30 : f32
    %11 = vector.broadcast %cst_4 : f32 to vector<16x16xf32>
    %12 = vector.broadcast %cst_5 : f32 to vector<16x16xf32>
    %13 = arith.select %10, %11, %12 : vector<16x16xi1>, vector<16x16xf32>
    %14 = vector.extract_strided_slice %3 {offsets = [0, 0], sizes = [16, 16], strides = [1, 1]} : vector<16x96xf32> to vector<16x16xf32>
    %15 = vector.extract_strided_slice %3 {offsets = [0, 32], sizes = [16, 16], strides = [1, 1]} : vector<16x96xf32> to vector<16x16xf32>
    %16 = vector.extract_strided_slice %3 {offsets = [0, 64], sizes = [16, 16], strides = [1, 1]} : vector<16x96xf32> to vector<16x16xf32>
    %17 = arith.truncf %14 : vector<16x16xf32> to vector<16x16xbf16>
    %18 = arith.truncf %15 : vector<16x16xf32> to vector<16x16xbf16>
    %cst_6 = arith.constant dense<0.000000e+00> : vector<16x16xf32>
    %19 = tpu.matmul %17, %18, %cst_6 {dimension_numbers = #tpu.dot_dimension_numbers<[1], [1], [0], [0], [0, 0, 1, 0], [], []>} : vector<16x16xbf16>, vector<16x16xbf16>, vector<16x16xf32> -> vector<16x16xf32>
    %20 = arith.addf %19, %13 : vector<16x16xf32>
    %cst_7 = arith.constant dense<0xFF800000> : vector<16xf32>
    %21 = vector.multi_reduction <maximumf>, %20, %cst_7 [1] : vector<16x16xf32> to vector<16xf32>
    %22 = vector.shape_cast %21 : vector<16xf32> to vector<16x1xf32>
    %23 = vector.broadcast %22 : vector<16x1xf32> to vector<16x16xf32>
    %24 = arith.subf %20, %23 : vector<16x16xf32>
    %25 = math.exp %24 : vector<16x16xf32>
    %cst_8 = arith.constant dense<0.000000e+00> : vector<16xf32>
    %26 = vector.multi_reduction <add>, %25, %cst_8 [1] : vector<16x16xf32> to vector<16xf32>
    %27 = vector.shape_cast %26 : vector<16xf32> to vector<16x1xf32>
    %28 = vector.broadcast %27 : vector<16x1xf32> to vector<16x16xf32>
    %29 = arith.divf %25, %28 : vector<16x16xf32>
    %30 = arith.truncf %29 : vector<16x16xf32> to vector<16x16xbf16>
    %31 = arith.truncf %16 : vector<16x16xf32> to vector<16x16xbf16>
    %cst_9 = arith.constant dense<0.000000e+00> : vector<16x16xf32>
    %32 = tpu.matmul %30, %31, %cst_9 {dimension_numbers = #tpu.dot_dimension_numbers<[1], [0], [0], [1], [0, 0, 1, 1], [], []>} : vector<16x16xbf16>, vector<16x16xbf16>, vector<16x16xf32> -> vector<16x16xf32>
    %c0_10 = arith.constant 0 : index
    %c0_11 = arith.constant 0 : index
    %33 = vector.load %arg6[%c0_10, %c0_11] : memref<16x32xf32, #tpu.memory_space<vmem>>, vector<16x16xf32>
    tpu.vector_store %arg6[%c0_10, %c0_11], %32 {strides = array<i32>} : memref<16x32xf32, #tpu.memory_space<vmem>>, vector<16x16xf32>,
    %34 = vector.extract_strided_slice %3 {offsets = [0, 16], sizes = [16, 16], strides = [1, 1]} : vector<16x96xf32> to vector<16x16xf32>
    %35 = vector.extract_strided_slice %3 {offsets = [0, 48], sizes = [16, 16], strides = [1, 1]} : vector<16x96xf32> to vector<16x16xf32>
    %36 = vector.extract_strided_slice %3 {offsets = [0, 80], sizes = [16, 16], strides = [1, 1]} : vector<16x96xf32> to vector<16x16xf32>
    %37 = arith.truncf %34 : vector<16x16xf32> to vector<16x16xbf16>
    %38 = arith.truncf %35 : vector<16x16xf32> to vector<16x16xbf16>
    %cst_12 = arith.constant dense<0.000000e+00> : vector<16x16xf32>
    %39 = tpu.matmul %37, %38, %cst_12 {dimension_numbers = #tpu.dot_dimension_numbers<[1], [1], [0], [0], [0, 0, 1, 0], [], []>} : vector<16x16xbf16>, vector<16x16xbf16>, vector<16x16xf32> -> vector<16x16xf32>
    %40 = arith.addf %39, %13 : vector<16x16xf32>
    %cst_13 = arith.constant dense<0xFF800000> : vector<16xf32>
    %41 = vector.multi_reduction <maximumf>, %40, %cst_13 [1] : vector<16x16xf32> to vector<16xf32>
    %42 = vector.shape_cast %41 : vector<16xf32> to vector<16x1xf32>
    %43 = vector.broadcast %42 : vector<16x1xf32> to vector<16x16xf32>
    %44 = arith.subf %40, %43 : vector<16x16xf32>
    %45 = math.exp %44 : vector<16x16xf32>
    %cst_14 = arith.constant dense<0.000000e+00> : vector<16xf32>
    %46 = vector.multi_reduction <add>, %45, %cst_14 [1] : vector<16x16xf32> to vector<16xf32>
    %47 = vector.shape_cast %46 : vector<16xf32> to vector<16x1xf32>
    %48 = vector.broadcast %47 : vector<16x1xf32> to vector<16x16xf32>
    %49 = arith.divf %45, %48 : vector<16x16xf32>
    %50 = arith.truncf %49 : vector<16x16xf32> to vector<16x16xbf16>
    %51 = arith.truncf %36 : vector<16x16xf32> to vector<16x16xbf16>
    %cst_15 = arith.constant dense<0.000000e+00> : vector<16x16xf32>
    %52 = tpu.matmul %50, %51, %cst_15 {dimension_numbers = #tpu.dot_dimension_numbers<[1], [0], [0], [1], [0, 0, 1, 1], [], []>} : vector<16x16xbf16>, vector<16x16xbf16>, vector<16x16xf32> -> vector<16x16xf32>
    %c0_16 = arith.constant 0 : index
    %c16 = arith.constant 16 : index
    %53 = vector.load %arg6[%c0_16, %c16] : memref<16x32xf32, #tpu.memory_space<vmem>>, vector<16x16xf32>
    tpu.vector_store %arg6[%c0_16, %c16], %52 {strides = array<i32>} : memref<16x32xf32, #tpu.memory_space<vmem>>, vector<16x16xf32>,
    %c0_17 = arith.constant 0 : index
    %c0_18 = arith.constant 0 : index
    %54 = vector.load %arg6[%c0_17, %c0_18] : memref<16x32xf32, #tpu.memory_space<vmem>>, vector<16x32xf32>
    %55 = arith.truncf %54 : vector<16x32xf32> to vector<16x32xbf16>
    %c0_19 = arith.constant 0 : index
    %c0_20 = arith.constant 0 : index
    %56 = vector.load %arg3[%c0_19, %c0_20] : memref<32x32xbf16, #tpu.memory_space<vmem>>, vector<32x32xbf16>
    %cst_21 = arith.constant dense<0.000000e+00> : vector<16x32xf32>
    %57 = tpu.matmul %55, %56, %cst_21 {dimension_numbers = #tpu.dot_dimension_numbers<[1], [0], [0], [1], [0, 0, 1, 1], [], []>} : vector<16x32xbf16>, vector<32x32xbf16>, vector<16x32xf32> -> vector<16x32xf32>
    %c0_22 = arith.constant 0 : index
    %c0_23 = arith.constant 0 : index
    %58 = vector.load %arg4[%c0_22, %c0_23] : memref<1x32xf32, #tpu.memory_space<vmem>>, vector<1x32xf32>
    %59 = vector.broadcast %58 : vector<1x32xf32> to vector<16x32xf32>
    %60 = arith.addf %57, %59 : vector<16x32xf32>
    %c0_24 = arith.constant 0 : index
    %c0_25 = arith.constant 0 : index
    %61 = vector.load %arg5[%c0_24, %c0_25] : memref<16x32xf32, #tpu.memory_space<vmem>>, vector<16x32xf32>
    tpu.vector_store %arg5[%c0_24, %c0_25], %60 {strides = array<i32>} : memref<16x32xf32, #tpu.memory_space<vmem>>, vector<16x32xf32>,
    return
  }
  func.func @transform_0(%arg0: i32) -> (i32, i32) {
    %c0_i32 = arith.constant 0 : i32
    %c0_i32_0 = arith.constant 0 : i32
    %c0_i32_1 = arith.constant 0 : i32
    return %c0_i32, %c0_i32_0 : i32, i32
  }
  func.func @transform_1(%arg0: i32) -> (i32, i32) {
    %c0_i32 = arith.constant 0 : i32
    %c0_i32_0 = arith.constant 0 : i32
    %c0_i32_1 = arith.constant 0 : i32
    return %c0_i32, %c0_i32_0 : i32, i32
  }
  func.func @transform_2(%arg0: i32) -> (i32, i32) {
    %c0_i32 = arith.constant 0 : i32
    %c0_i32_0 = arith.constant 0 : i32
    %c0_i32_1 = arith.constant 0 : i32
    return %c0_i32, %c0_i32_0 : i32, i32
  }
  func.func @transform_3(%arg0: i32) -> (i32, i32) {
    %c0_i32 = arith.constant 0 : i32
    %c0_i32_0 = arith.constant 0 : i32
    %c0_i32_1 = arith.constant 0 : i32
    return %c0_i32, %c0_i32_0 : i32, i32
  }
  func.func @transform_4(%arg0: i32) -> (i32, i32) {
    %c0_i32 = arith.constant 0 : i32
    %c0_i32_0 = arith.constant 0 : i32
    %c0_i32_1 = arith.constant 0 : i32
    return %c0_i32, %c0_i32_0 : i32, i32
  }
}

</mosaic_0001>

<llo_original>
// kernel: dot_product_attention.1
$region0: #{dot_product_attention.1}
  #allocation0 [shape = 'u32[]', space=smem, size = 0x4, offset = 0x4, fixed_abs, tag = 'smem constant byte address 0x4 - core index']
  #allocation1 [shape = 'u32[144,128]{1,0:T(1,128)}', space=vmem, size = 0x12000, scoped, tag = 'internal scratch']
  #allocation2 [shape = 'f32[16,32]{1,0:T(8,128)}', space=vmem, size = 0x2000, scoped, tag = 'scratch operand']
  %s0 = inlined_call_operand.hbm [shape: f32[16,32], index: 0, kind: input, shape index: {}]
  %s1 = inlined_call_operand.hbm [shape: bf16[32,96], index: 1, kind: input, shape index: {}]
  %s2 = inlined_call_operand.hbm [shape: bf16[32,32], index: 2, kind: input, shape index: {}]
  %s3 = inlined_call_operand.vmem [shape: f32[1,32], index: 3, kind: input, shape index: {}]
  %s4 = inlined_call_operand.hbm [shape: f32[16,32], index: 4, kind: output, shape index: {}]
  %s5 = sld [smem:[#allocation0]]
  $region38: #{dot_product_attention.1} parent=0
    _
  %s7 = ssub.s32 1, %s5
  %s8 = scalar_select 0, %s7, %s5
  $region1: #{dot_product_attention.1} parent=0
    #allocation3 [shape = 'u8[8192]{0}', space=vmem, size = 0x2000, scoped, tag = 'input window, operand 0, single buffered']
    #allocation4 [shape = 's32[1]{0}', space=sflag, size = 0x4, scoped, tag = 'scoped memory for dot_product_attention.1']
    #allocation5 [shape = 's32[1]{0}', space=sflag, size = 0x4, scoped, tag = 'scoped memory for dot_product_attention.1']
    #allocation6 [shape = 'u8[8192]{0}', space=vmem, size = 0x2000, scoped, tag = 'input window, operand 1, single buffered']
    #allocation7 [shape = 's32[1]{0}', space=sflag, size = 0x4, scoped, tag = 'scoped memory for dot_product_attention.1']
    #allocation8 [shape = 'u8[8192]{0}', space=vmem, size = 0x2000, scoped, tag = 'input window, operand 2, single buffered']
    #allocation9 [shape = 'u8[8192]{0}', space=vmem, size = 0x2000, scoped, tag = 'output window, operand 0, single buffered']
    %9 = vsyncpa [#allocation4], 0
    %10 = vsyncpa [#allocation7], 0
    %11 = vsyncpa [#allocation5], 0
    // Predicated region
    $region2: #{dot_product_attention.1} parent=1 // pred_check
      _
    $region3: #{dot_product_attention.1} parent=1 // pred_check_branch
      %13 = sbr.rel (0) target = $region5
    $region4: #{dot_product_attention.1} parent=1 // pred_region
      %s15 = ssub.s32 256, 256
      %16 = vsyncadd [#allocation4], %s15
      %s17 = sshll.u32 [#allocation3], 4
      %s18 = int_to_ptr.vmem [resolvable:$true] %s17
      %23 = dma.hbm_to_vmem [thread:$0]  %s0, 256, %s18, [#allocation4], 128, 128, 8
    $region5: #{dot_product_attention.1} parent=1 // pred_fallthru
      _
    // Predicated region
    $region6: #{dot_product_attention.1} parent=1 // pred_check
      _
    $region7: #{dot_product_attention.1} parent=1 // pred_check_branch
      %25 = sbr.rel (0) target = $region9
    $region8: #{dot_product_attention.1} parent=1 // pred_region
      %s27 = ssub.s32 256, 256
      %28 = vsyncadd [#allocation7], %s27
      %s29 = sshll.u32 [#allocation6], 4
      %s30 = int_to_ptr.vmem [resolvable:$true] %s29
      %35 = dma.hbm_to_vmem [thread:$0]  %s1, 256, %s30, [#allocation7], 64, 64, 4
    $region9: #{dot_product_attention.1} parent=1 // pred_fallthru
      _
    // Predicated region
    $region10: #{dot_product_attention.1} parent=1 // pred_check
      _
    $region11: #{dot_product_attention.1} parent=1 // pred_check_branch
      %37 = sbr.rel (0) target = $region13
    $region12: #{dot_product_attention.1} parent=1 // pred_region
      %s39 = ssub.s32 256, 256
      %40 = vsyncadd [#allocation7], %s39
      %s41 = sshll.u32 [#allocation8], 4
      %s42 = int_to_ptr.vmem [resolvable:$true] %s41
      %47 = dma.hbm_to_vmem [thread:$0]  %s2, 256, %s42, [#allocation7], 64, 64, 4
    $region13: #{dot_product_attention.1} parent=1 // pred_fallthru
      _
    // Predicated region
    $region14: #{dot_product_attention.1} parent=1 // pred_check
      _
    $region15: #{dot_product_attention.1} parent=1 // pred_check_branch
      %49 = sbr.rel (0) target = $region17
    $region16: #{dot_product_attention.1} parent=1 // pred_region
      _
    $region17: #{dot_product_attention.1} parent=1 // pred_fallthru
      _
    // Predicated region
    $region18: #{dot_product_attention.1} parent=1 // pred_check
      _
    $region19: #{dot_product_attention.1} parent=1 // pred_check_branch
      %51 = sbr.rel (0) target = $region21
    $region20: #{dot_product_attention.1} parent=1 // pred_region
      %52 = dma.done [#allocation4], 256
    $region21: #{dot_product_attention.1} parent=1 // pred_fallthru
      _
    // Predicated region
    $region22: #{dot_product_attention.1} parent=1 // pred_check
      _
    $region23: #{dot_product_attention.1} parent=1 // pred_check_branch
      %54 = sbr.rel (0) target = $region25
    $region24: #{dot_product_attention.1} parent=1 // pred_region
      %55 = dma.done [#allocation7], 256
    $region25: #{dot_product_attention.1} parent=1 // pred_fallthru
      _
    // Predicated region
    $region26: #{dot_product_attention.1} parent=1 // pred_check
      _
    $region27: #{dot_product_attention.1} parent=1 // pred_check_branch
      %57 = sbr.rel (0) target = $region29
    $region28: #{dot_product_attention.1} parent=1 // pred_region
      %58 = dma.done [#allocation7], 256
    $region29: #{dot_product_attention.1} parent=1 // pred_fallthru
      _
    %v60 = vld [vmem:[#allocation3] sm:$0xff]
    %v61 = vld [vmem:[#allocation3 + $0x8] sm:$0xff]
    %v62 = vpack.c.bf16 %v61, %v60
    %v63 = vld [vmem:[#allocation6] sm:$0xf]
    %v64 = vld [vmem:[#allocation6 + $0x4] sm:$0xf]
    %v65 = vld [vmem:[#allocation6 + $0x8] sm:$0xf]
    %v66 = vld [vmem:[#allocation6 + $0xc] sm:$0xf]
    %v71 = vunpack.c.l.b16 %v63
    %v72 = vunpack.c.l.b16 %v64
    %v73 = vunpack.c.l.b16 %v65
    %v74 = vunpack.c.l.b16 %v66
    %v75 = vpack.c.b16 %v72, %v71
    %v76 = vpack.c.b16 %v74, %v73
    %vm79 = vcmask 261120
    %v81 = vsel %vm79, %v62, 0
    %83 = vmatprep.subr.bf16.mxu0 0
    %84 = vmatpush1.bf16.msra.mxu0 %v75
    %85 = vmatprep.subr.bf16.mxu0 0
    %86 = vmatpush1.bf16.msra.mxu0 %v76
    %87 = vmatprep.subr.bf16.mxu0 0
    %88 = vmatpush1.bf16.msra.mxu0 0
    %89 = vmatprep.subr.bf16.mxu0 0
    %90 = vmatpush1.bf16.msra.mxu0 0
    %91 = vmatprep.subr.bf16.mxu0 0
    %92 = vmatpush1.bf16.msra.mxu0 0
    %93 = vmatprep.subr.bf16.mxu0 0
    %94 = vmatpush1.bf16.msra.mxu0 0
    %95 = vmatprep.subr.bf16.mxu0 0
    %96 = vmatpush1.bf16.msra.mxu0 0
    %97 = vmatprep.subr.bf16.mxu0 0
    %98 = vmatpush1.bf16.msra.mxu0 0
    %99 = vmatprep.subr.bf16.mxu0 0
    %100 = vmatpush1.bf16.msra.mxu0 0
    %101 = vmatprep.subr.bf16.mxu0 0
    %102 = vmatpush1.bf16.msra.mxu0 0
    %103 = vmatprep.subr.bf16.mxu0 0
    %104 = vmatpush1.bf16.msra.mxu0 0
    %105 = vmatprep.subr.bf16.mxu0 0
    %106 = vmatpush1.bf16.msra.mxu0 0
    %107 = vmatprep.subr.bf16.mxu0 0
    %108 = vmatpush1.bf16.msra.mxu0 0
    %109 = vmatprep.subr.bf16.mxu0 0
    %110 = vmatpush1.bf16.msra.mxu0 0
    %111 = vmatprep.subr.bf16.mxu0 0
    %112 = vmatpush1.bf16.msra.mxu0 0
    %113 = vmatprep.subr.bf16.mxu0 0
    %114 = vmatpush1.bf16.msra.mxu0 0
    %115 = vmatprep.mubr.bf16.mxu0 0
    %116 = vmatmul.mubr.bf16.gmra.mrb[0].mxu0 %v81
    %v117 = vpop.f32.mrb[0].mxu0
    %v118 = vadd.f32 0.0, %v117
    %v119 = vpop.f32.mrb[0].mxu0
    %v120 = vpop.f32.mrb[0].mxu0
    %v121 = vadd.f32 0.0, %v120
    %v122 = vpop.f32.mrb[0].mxu0
    %123 = vdwg.mxu0
    %v124 = vlaneseq
    %v125 = vshrl.u32 %v124, 7
    %v126 = vadd.s32 %v125, 8
    %v127 = vshra.s32 %v125, 3
    %v128 = vshra.s32 %v126, 3
    %v129 = vlaneseq
    %v130 = vand.u32 %v129, 127
    %v131 = vshra.s32 %v130, 3
    %vm132 = vcmp.eq.s32.totalorder %v127, %v131
    %vm133 = vcmp.eq.s32.totalorder %v128, %v131
    %v134 = vsel %vm132, 0.0, -1e+30
    %v135 = vsel %vm133, 0.0, -1e+30
    %v136 = vpack.c.bf16 %v121, %v118
    %138 = vrot.lane.b32.xlu0 %v136, 96
    %v139 = vpop.permute.xlu0 %138
    %vm140 = vcmask 130048
    %v142 = vsel %vm140, %v136, 0
    %v145 = vsel %vm140, %v139, 0
    %147 = vmatprep.subr.bf16.mxu0 0
    %148 = vmatpush1.bf16.xpose.msra.mxu0 %v145
    %149 = vmatprep.subr.bf16.mxu0 0
    %150 = vmatpush1.bf16.xpose.msra.mxu0 0
    %151 = vmatprep.subr.bf16.mxu0 0
    %152 = vmatpush1.bf16.xpose.msra.mxu0 0
    %153 = vmatprep.subr.bf16.mxu0 0
    %154 = vmatpush1.bf16.xpose.msra.mxu0 0
    %155 = vmatprep.subr.bf16.mxu0 0
    %156 = vmatpush1.bf16.xpose.msra.mxu0 0
    %157 = vmatprep.subr.bf16.mxu0 0
    %158 = vmatpush1.bf16.xpose.msra.mxu0 0
    %159 = vmatprep.subr.bf16.mxu0 0
    %160 = vmatpush1.bf16.xpose.msra.mxu0 0
    %161 = vmatprep.subr.bf16.mxu0 0
    %162 = vmatpush1.bf16.xpose.msra.mxu0 0
    %163 = vmatprep.subr.bf16.mxu0 0
    %164 = vmatpush1.bf16.xpose.msra.mxu0 0
    %165 = vmatprep.subr.bf16.mxu0 0
    %166 = vmatpush1.bf16.xpose.msra.mxu0 0
    %167 = vmatprep.subr.bf16.mxu0 0
    %168 = vmatpush1.bf16.xpose.msra.mxu0 0
    %169 = vmatprep.subr.bf16.mxu0 0
    %170 = vmatpush1.bf16.xpose.msra.mxu0 0
    %171 = vmatprep.subr.bf16.mxu0 0
    %172 = vmatpush1.bf16.xpose.msra.mxu0 0
    %173 = vmatprep.subr.bf16.mxu0 0
    %174 = vmatpush1.bf16.xpose.msra.mxu0 0
    %175 = vmatprep.subr.bf16.mxu0 0
    %176 = vmatpush1.bf16.xpose.msra.mxu0 0
    %177 = vmatprep.subr.bf16.mxu0 0
    %178 = vmatpush1.bf16.xpose.msra.mxu0 0
    %179 = vmatprep.mubr.bf16.mxu0 0
    %180 = vmatmul.mubr.bf16.gmra.mrb[0].mxu0 %v142
    %v181 = vpop.f32.mrb[0].mxu0
    %v182 = vadd.f32 %v134, %v181
    %v183 = vpop.f32.mrb[0].mxu0
    %v184 = vpop.f32.mrb[0].mxu0
    %v185 = vadd.f32 %v135, %v184
    %v186 = vpop.f32.mrb[0].mxu0
    %187 = vdwg.mxu0
    %v188 = vsel %vm140, %v182, -inf
    %189 = vmax.xlane.f32.xlu0 %v188
    %v190 = vpop.xlane.xlu0 %189
    %v191 = vsel %vm140, %v185, -inf
    %192 = vmax.xlane.f32.xlu0 %v191
    %v193 = vpop.xlane.xlu0 %192
    %v194 = vsub.f32 %v182, %v190
    %v195 = vsub.f32 %v185, %v193
    %v196 = vmul.f32 %v194, 1.442695
    %v197 = vpow.pop %v196
    %v198 = vmul.f32 %v195, 1.442695
    %v199 = vpow.pop %v198
    %v200 = vsel %vm140, %v197, 0.0
    %201 = vadd.xlane.f32.xlu0 %v200
    %v202 = vpop.xlane.xlu0 %201
    %v203 = vsel %vm140, %v199, 0.0
    %204 = vadd.xlane.f32.xlu0 %v203
    %v205 = vpop.xlane.xlu0 %204
    %v206 = vrcp.pop %v202
    %v207 = vmul.f32 %v197, %v206
    %v208 = vrcp.pop %v205
    %v209 = vmul.f32 %v199, %v208
    %v210 = vpack.c.bf16 %v209, %v207
    %211 = vrot.lane.b32.xlu0 %v136, 64
    %v212 = vpop.permute.xlu0 %211
    %v215 = vsel %vm140, %v210, 0
    %217 = vmatprep.subr.bf16.mxu0 0
    %218 = vmatpush1.bf16.msra.mxu0 %v212
    %219 = vmatprep.subr.bf16.mxu0 0
    %220 = vmatpush1.bf16.msra.mxu0 0
    %221 = vmatprep.subr.bf16.mxu0 0
    %222 = vmatpush1.bf16.msra.mxu0 0
    %223 = vmatprep.subr.bf16.mxu0 0
    %224 = vmatpush1.bf16.msra.mxu0 0
    %225 = vmatprep.subr.bf16.mxu0 0
    %226 = vmatpush1.bf16.msra.mxu0 0
    %227 = vmatprep.subr.bf16.mxu0 0
    %228 = vmatpush1.bf16.msra.mxu0 0
    %229 = vmatprep.subr.bf16.mxu0 0
    %230 = vmatpush1.bf16.msra.mxu0 0
    %231 = vmatprep.subr.bf16.mxu0 0
    %232 = vmatpush1.bf16.msra.mxu0 0
    %233 = vmatprep.subr.bf16.mxu0 0
    %234 = vmatpush1.bf16.msra.mxu0 0
    %235 = vmatprep.subr.bf16.mxu0 0
    %236 = vmatpush1.bf16.msra.mxu0 0
    %237 = vmatprep.subr.bf16.mxu0 0
    %238 = vmatpush1.bf16.msra.mxu0 0
    %239 = vmatprep.subr.bf16.mxu0 0
    %240 = vmatpush1.bf16.msra.mxu0 0
    %241 = vmatprep.subr.bf16.mxu0 0
    %242 = vmatpush1.bf16.msra.mxu0 0
    %243 = vmatprep.subr.bf16.mxu0 0
    %244 = vmatpush1.bf16.msra.mxu0 0
    %245 = vmatprep.subr.bf16.mxu0 0
    %246 = vmatpush1.bf16.msra.mxu0 0
    %247 = vmatprep.subr.bf16.mxu0 0
    %248 = vmatpush1.bf16.msra.mxu0 0
    %249 = vmatprep.mubr.bf16.mxu0 0
    %250 = vmatmul.mubr.bf16.gmra.mrb[0].mxu0 %v215
    %v251 = vpop.f32.mrb[0].mxu0
    %v252 = vadd.f32 0.0, %v251
    %v253 = vpop.f32.mrb[0].mxu0
    %v254 = vpop.f32.mrb[0].mxu0
    %v255 = vadd.f32 0.0, %v254
    %v256 = vpop.f32.mrb[0].mxu0
    %257 = vdwg.mxu0
    %258 = vst.msk [vmem:[#allocation2] sm:$0xff] %vm140, %v252
    %259 = vst.msk [vmem:[#allocation2 + $0x8] sm:$0xff] %vm140, %v255
    %260 = vrot.lane.b32.xlu0 %v136, 112
    %v261 = vpop.permute.xlu0 %260
    %262 = vrot.lane.b32.xlu0 %v136, 80
    %v263 = vpop.permute.xlu0 %262
    %v265 = vsel %vm140, %v261, 0
    %v268 = vsel %vm140, %v263, 0
    %270 = vmatprep.subr.bf16.mxu0 0
    %271 = vmatpush1.bf16.xpose.msra.mxu0 %v268
    %272 = vmatprep.subr.bf16.mxu0 0
    %273 = vmatpush1.bf16.xpose.msra.mxu0 0
    %274 = vmatprep.subr.bf16.mxu0 0
    %275 = vmatpush1.bf16.xpose.msra.mxu0 0
    %276 = vmatprep.subr.bf16.mxu0 0
    %277 = vmatpush1.bf16.xpose.msra.mxu0 0
    %278 = vmatprep.subr.bf16.mxu0 0
    %279 = vmatpush1.bf16.xpose.msra.mxu0 0
    %280 = vmatprep.subr.bf16.mxu0 0
    %281 = vmatpush1.bf16.xpose.msra.mxu0 0
    %282 = vmatprep.subr.bf16.mxu0 0
    %283 = vmatpush1.bf16.xpose.msra.mxu0 0
    %284 = vmatprep.subr.bf16.mxu0 0
    %285 = vmatpush1.bf16.xpose.msra.mxu0 0
    %286 = vmatprep.subr.bf16.mxu0 0
    %287 = vmatpush1.bf16.xpose.msra.mxu0 0
    %288 = vmatprep.subr.bf16.mxu0 0
    %289 = vmatpush1.bf16.xpose.msra.mxu0 0
    %290 = vmatprep.subr.bf16.mxu0 0
    %291 = vmatpush1.bf16.xpose.msra.mxu0 0
    %292 = vmatprep.subr.bf16.mxu0 0
    %293 = vmatpush1.bf16.xpose.msra.mxu0 0
    %294 = vmatprep.subr.bf16.mxu0 0
    %295 = vmatpush1.bf16.xpose.msra.mxu0 0
    %296 = vmatprep.subr.bf16.mxu0 0
    %297 = vmatpush1.bf16.xpose.msra.mxu0 0
    %298 = vmatprep.subr.bf16.mxu0 0
    %299 = vmatpush1.bf16.xpose.msra.mxu0 0
    %300 = vmatprep.subr.bf16.mxu0 0
    %301 = vmatpush1.bf16.xpose.msra.mxu0 0
    %302 = vmatprep.mubr.bf16.mxu0 0
    %303 = vmatmul.mubr.bf16.gmra.mrb[0].mxu0 %v265
    %v304 = vpop.f32.mrb[0].mxu0
    %v305 = vadd.f32 %v134, %v304
    %v306 = vpop.f32.mrb[0].mxu0
    %v307 = vpop.f32.mrb[0].mxu0
    %v308 = vadd.f32 %v135, %v307
    %v309 = vpop.f32.mrb[0].mxu0
    %310 = vdwg.mxu0
    %v311 = vsel %vm140, %v305, -inf
    %312 = vmax.xlane.f32.xlu0 %v311
    %v313 = vpop.xlane.xlu0 %312
    %v314 = vsel %vm140, %v308, -inf
    %315 = vmax.xlane.f32.xlu0 %v314
    %v316 = vpop.xlane.xlu0 %315
    %v317 = vsub.f32 %v305, %v313
    %v318 = vsub.f32 %v308, %v316
    %v319 = vmul.f32 %v317, 1.442695
    %v320 = vpow.pop %v319
    %v321 = vmul.f32 %v318, 1.442695
    %v322 = vpow.pop %v321
    %v323 = vsel %vm140, %v320, 0.0
    %324 = vadd.xlane.f32.xlu0 %v323
    %v325 = vpop.xlane.xlu0 %324
    %v326 = vsel %vm140, %v322, 0.0
    %327 = vadd.xlane.f32.xlu0 %v326
    %v328 = vpop.xlane.xlu0 %327
    %v329 = vrcp.pop %v325
    %v330 = vmul.f32 %v320, %v329
    %v331 = vrcp.pop %v328
    %v332 = vmul.f32 %v322, %v331
    %v333 = vpack.c.bf16 %v332, %v330
    %334 = vrot.lane.b32.xlu0 %v136, 48
    %v335 = vpop.permute.xlu0 %334
    %v338 = vsel %vm140, %v333, 0
    %340 = vmatprep.subr.bf16.mxu0 0
    %341 = vmatpush1.bf16.msra.mxu0 %v335
    %342 = vmatprep.subr.bf16.mxu0 0
    %343 = vmatpush1.bf16.msra.mxu0 0
    %344 = vmatprep.subr.bf16.mxu0 0
    %345 = vmatpush1.bf16.msra.mxu0 0
    %346 = vmatprep.subr.bf16.mxu0 0
    %347 = vmatpush1.bf16.msra.mxu0 0
    %348 = vmatprep.subr.bf16.mxu0 0
    %349 = vmatpush1.bf16.msra.mxu0 0
    %350 = vmatprep.subr.bf16.mxu0 0
    %351 = vmatpush1.bf16.msra.mxu0 0
    %352 = vmatprep.subr.bf16.mxu0 0
    %353 = vmatpush1.bf16.msra.mxu0 0
    %354 = vmatprep.subr.bf16.mxu0 0
    %355 = vmatpush1.bf16.msra.mxu0 0
    %356 = vmatprep.subr.bf16.mxu0 0
    %357 = vmatpush1.bf16.msra.mxu0 0
    %358 = vmatprep.subr.bf16.mxu0 0
    %359 = vmatpush1.bf16.msra.mxu0 0
    %360 = vmatprep.subr.bf16.mxu0 0
    %361 = vmatpush1.bf16.msra.mxu0 0
    %362 = vmatprep.subr.bf16.mxu0 0
    %363 = vmatpush1.bf16.msra.mxu0 0
    %364 = vmatprep.subr.bf16.mxu0 0
    %365 = vmatpush1.bf16.msra.mxu0 0
    %366 = vmatprep.subr.bf16.mxu0 0
    %367 = vmatpush1.bf16.msra.mxu0 0
    %368 = vmatprep.subr.bf16.mxu0 0
    %369 = vmatpush1.bf16.msra.mxu0 0
    %370 = vmatprep.subr.bf16.mxu0 0
    %371 = vmatpush1.bf16.msra.mxu0 0
    %372 = vmatprep.mubr.bf16.mxu0 0
    %373 = vmatmul.mubr.bf16.gmra.mrb[0].mxu0 %v338
    %v374 = vpop.f32.mrb[0].mxu0
    %v375 = vadd.f32 0.0, %v374
    %v376 = vpop.f32.mrb[0].mxu0
    %v377 = vpop.f32.mrb[0].mxu0
    %v378 = vadd.f32 0.0, %v377
    %v379 = vpop.f32.mrb[0].mxu0
    %380 = vdwg.mxu0
    %383 = vrot.lane.b32.xlu0 %v375, 16
    %v384 = vpop.permute.xlu0 %383
    %385 = vrot.lane.b32.xlu0 %v378, 16
    %v386 = vpop.permute.xlu0 %385
    %vm389 = vcmask 261248
    %390 = vst.msk [vmem:[#allocation2] sm:$0xff] %vm389, %v384
    %391 = vst.msk [vmem:[#allocation2 + $0x8] sm:$0xff] %vm389, %v386
    %v392 = vld [vmem:[#allocation2] sm:$0xff]
    %v393 = vld [vmem:[#allocation2 + $0x8] sm:$0xff]
    %v394 = vpack.c.bf16 %v393, %v392
    %v395 = vld [vmem:[#allocation8] sm:$0xf]
    %v396 = vld [vmem:[#allocation8 + $0x4] sm:$0xf]
    %v397 = vld [vmem:[#allocation8 + $0x8] sm:$0xf]
    %v398 = vld [vmem:[#allocation8 + $0xc] sm:$0xf]
    %v399 = vld [vmem:[%s3] sm:$0x1]
    %v401 = vlaneseq
    %v402 = vshrl.u32 %v401, 7
    %v403 = vsub.s32 0, %v402
    %v404 = vrot.slane %v399, %v403
    %v410 = vunpack.c.l.b16 %v395
    %v411 = vunpack.c.l.b16 %v396
    %v412 = vunpack.c.l.b16 %v397
    %v413 = vunpack.c.l.b16 %v398
    %v414 = vpack.c.b16 %v411, %v410
    %v415 = vpack.c.b16 %v413, %v412
    %v419 = vsel %vm79, %v394, 0
    %421 = vmatprep.subr.bf16.mxu0 0
    %422 = vmatpush1.bf16.msra.mxu0 %v414
    %423 = vmatprep.subr.bf16.mxu0 0
    %424 = vmatpush1.bf16.msra.mxu0 %v415
    %425 = vmatprep.subr.bf16.mxu0 0
    %426 = vmatpush1.bf16.msra.mxu0 0
    %427 = vmatprep.subr.bf16.mxu0 0
    %428 = vmatpush1.bf16.msra.mxu0 0
    %429 = vmatprep.subr.bf16.mxu0 0
    %430 = vmatpush1.bf16.msra.mxu0 0
    %431 = vmatprep.subr.bf16.mxu0 0
    %432 = vmatpush1.bf16.msra.mxu0 0
    %433 = vmatprep.subr.bf16.mxu0 0
    %434 = vmatpush1.bf16.msra.mxu0 0
    %435 = vmatprep.subr.bf16.mxu0 0
    %436 = vmatpush1.bf16.msra.mxu0 0
    %437 = vmatprep.subr.bf16.mxu0 0
    %438 = vmatpush1.bf16.msra.mxu0 0
    %439 = vmatprep.subr.bf16.mxu0 0
    %440 = vmatpush1.bf16.msra.mxu0 0
    %441 = vmatprep.subr.bf16.mxu0 0
    %442 = vmatpush1.bf16.msra.mxu0 0
    %443 = vmatprep.subr.bf16.mxu0 0
    %444 = vmatpush1.bf16.msra.mxu0 0
    %445 = vmatprep.subr.bf16.mxu0 0
    %446 = vmatpush1.bf16.msra.mxu0 0
    %447 = vmatprep.subr.bf16.mxu0 0
    %448 = vmatpush1.bf16.msra.mxu0 0
    %449 = vmatprep.subr.bf16.mxu0 0
    %450 = vmatpush1.bf16.msra.mxu0 0
    %451 = vmatprep.subr.bf16.mxu0 0
    %452 = vmatpush1.bf16.msra.mxu0 0
    %453 = vmatprep.mubr.bf16.mxu0 0
    %454 = vmatmul.mubr.bf16.gmra.mrb[0].mxu0 %v419
    %v455 = vpop.f32.mrb[0].mxu0
    %v456 = vadd.f32 %v404, %v455
    %v457 = vpop.f32.mrb[0].mxu0
    %v458 = vpop.f32.mrb[0].mxu0
    %v459 = vadd.f32 %v404, %v458
    %v460 = vpop.f32.mrb[0].mxu0
    %461 = vdwg.mxu0
    %462 = vst.msk [vmem:[#allocation9] sm:$0xff] %vm79, %v456
    %463 = vst.msk [vmem:[#allocation9 + $0x8] sm:$0xff] %vm79, %v459
    // Predicated region
    $region30: #{dot_product_attention.1} parent=1 // pred_check
      _
    $region31: #{dot_product_attention.1} parent=1 // pred_check_branch
      %465 = sbr.rel (0) target = $region33
    $region32: #{dot_product_attention.1} parent=1 // pred_region
      %s467 = ssub.s32 256, 256
      %468 = vsyncadd [#allocation5], %s467
      %s469 = sshll.u32 [#allocation9], 4
      %s470 = int_to_ptr.vmem [resolvable:$true] %s469
      %475 = dma.vmem_to_hbm [thread:$0]  %s470, 256, %s4, [#allocation5], 128, 128, 8
    $region33: #{dot_product_attention.1} parent=1 // pred_fallthru
      _
    // Predicated region
    $region34: #{dot_product_attention.1} parent=1 // pred_check
      _
    $region35: #{dot_product_attention.1} parent=1 // pred_check_branch
      %477 = sbr.rel (0) target = $region37
    $region36: #{dot_product_attention.1} parent=1 // pred_region
      %478 = dma.done [#allocation5], 256
    $region37: #{dot_product_attention.1} parent=1 // pred_fallthru
      _
    %479 = vsyncpa [#allocation4], 1
    %480 = vsyncpa [#allocation7], 1
    %481 = vsyncpa [#allocation5], 1

</llo_original>
